<compile_context>
chip_gen: v5e
topology: v5e:2x2
jax: 0.10.0
libtpu: 0.0.40
codegen_flags: <defaults>
</compile_context>

<pallas_src>
import functools

import jax
import jax.numpy as jnp
from jax.experimental import pallas as pl
from jax.experimental.pallas import tpu as pltpu


def dueling_kernel(mean_a_ref, x_ref, w_ref, b_ref, q_ref, *, adv_col):
    """One batch tile of the fused dueling head.

    mean_a_ref: (1, 1)  SMEM   global mean(A) = mean_batch(x) @ W_A + b_A
    x_ref:      (TB, D) VMEM   input activations tile
    w_ref:      (D, OPAD) VMEM fused weights: [:, :O] = W_V, [:, O] = W_A, rest 0
    b_ref:      (1, OPAD) VMEM fused biases:  [:, :O] = b_V, [:, O] = b_A, rest 0
    q_ref:      (TB, OPAD) VMEM output; valid columns are [:, :O]
    """
    x = x_ref[...]
    # Single fused MXU pass for both heads (value columns + advantage column).
    y = jnp.dot(x, w_ref[...], preferred_element_type=jnp.float32) + b_ref[...]
    a = y[:, adv_col:adv_col + 1]                 # A = x @ W_A + b_A   (TB, 1)
    # Q = V + (A - mean(A)); broadcast of A over the lane axis, lane-dense store.
    q_ref[...] = y + (a - mean_a_ref[0, 0])


def dueling_forward(x, w_a, b_a, w_v, b_v, *, block_b=512):
    """Dueling head: Q = (x @ W_V + b_V) + ((x @ W_A + b_A) - mean(x @ W_A + b_A))."""
    B, D = x.shape
    O = w_v.shape[1]

    # Lane-dense padded output width; the advantage head lives in column O.
    opad = max(128, pl.cdiv(O + 1, 128) * 128)

    # Fused, lane-padded parameters (a static transform of the weights).
    w_cat = jnp.zeros((D, opad), jnp.float32)
    w_cat = w_cat.at[:, :O].set(w_v.astype(jnp.float32))
    w_cat = w_cat.at[:, O].set(w_a[:, 0].astype(jnp.float32))
    b_cat = jnp.zeros((1, opad), jnp.float32)
    b_cat = b_cat.at[:, :O].set(b_v.astype(jnp.float32))
    b_cat = b_cat.at[:, O].set(b_a[0, 0].astype(jnp.float32))

    # Global scalar mean(A) = mean_over_batch(x) @ W_A + b_A (tiny XLA reduce).
    # This makes every batch tile independent, so the grid axis is "parallel".
    mean_a = (jnp.mean(x, axis=0, keepdims=True) @ w_a + b_a)
    mean_a = mean_a.reshape(1, 1).astype(jnp.float32)

    # Batch tiling: tile rows in multiples of 8; fall back to a single tile
    # when the batch does not divide evenly.
    if B % block_b == 0 and block_b % 8 == 0:
        tb = block_b
    else:
        tb = B
    grid = (B // tb,)

    q_pad = pl.pallas_call(
        functools.partial(dueling_kernel, adv_col=O),
        out_shape=jax.ShapeDtypeStruct((B, opad), jnp.float32),
        grid=grid,
        in_specs=[
            pl.BlockSpec(memory_space=pltpu.MemorySpace.SMEM),  # mean(A) scalar
            pl.BlockSpec((tb, D), lambda i: (i, 0)),            # x batch tile
            pl.BlockSpec((D, opad), lambda i: (0, 0)),          # fused weights
            pl.BlockSpec((1, opad), lambda i: (0, 0)),          # fused bias row
        ],
        out_specs=pl.BlockSpec((tb, opad), lambda i: (i, 0)),
        compiler_params=pltpu.CompilerParams(
            dimension_semantics=("parallel",),
        ),
    )(mean_a, x, w_cat, b_cat)

    # Drop the padding / advantage columns (cheap XLA slice).
    return q_pad[:, :O]


if __name__ == "__main__":
    key = jax.random.PRNGKey(0)
    B, in_size, out_size = 16, 32, 16

    k_x, k_wa, k_ba, k_wv, k_bv = jax.random.split(key, 5)

    # Deterministic synthetic parameters (PyTorch init: weight ~ N(0, 0.01),
    # bias ~ U(-1/sqrt(in), 1/sqrt(in))).
    x = jax.random.normal(k_x, (B, in_size), dtype=jnp.float32)
    w_a = 0.01 * jax.random.normal(k_wa, (in_size, 1), dtype=jnp.float32)
    w_v = 0.01 * jax.random.normal(k_wv, (in_size, out_size), dtype=jnp.float32)
    bound = 1.0 / jnp.sqrt(jnp.float32(in_size))
    b_a = jax.random.uniform(k_ba, (1, 1), minval=-bound, maxval=bound, dtype=jnp.float32)
    b_v = jax.random.uniform(k_bv, (1, out_size), minval=-bound, maxval=bound, dtype=jnp.float32)

    # block_b=8 -> grid of 2 batch tiles, exercising the parallel batch grid.
    q = dueling_forward(x, w_a, b_a, w_v, b_v, block_b=8)
    q = jax.block_until_ready(q)

    # Pure-JAX reference check (unfused math, exactly the PyTorch forward).
    a_ref = x @ w_a + b_a
    v_ref = x @ w_v + b_v
    q_ref = v_ref + (a_ref - jnp.mean(a_ref))
    assert q.shape == (B, out_size)
    assert jnp.allclose(q, q_ref, atol=1e-5, rtol=1e-5)

    print("KERNEL_OK")
</pallas_src>

<mosaic_0001>
module attributes {stable_mosaic.version = 11 : i64} {
  func.func @dueling_kernel(%arg0: i32, %arg1: memref<1x1xf32, #tpu.memory_space<smem>>, %arg2: memref<8x32xf32, #tpu.memory_space<vmem>>, %arg3: memref<32x128xf32, #tpu.memory_space<vmem>>, %arg4: memref<1x128xf32, #tpu.memory_space<vmem>>, %arg5: memref<8x128xf32, #tpu.memory_space<vmem>>) attributes {dimension_semantics = [#tpu.dimension_semantics<parallel>], iteration_bounds = array<i64: 2>, scalar_prefetch = 0 : i64, scratch_operands = 0 : i64, tpu.core_type = #tpu.core_type<tc>, window_params = [{transform_indices = @transform_0, window_bounds = array<i64: 1, 1>}, {transform_indices = @transform_1, window_bounds = array<i64: 8, 32>}, {pipeline_mode = #tpu.pipeline_mode<synchronous>, transform_indices = @transform_2, window_bounds = array<i64: 32, 128>}, {pipeline_mode = #tpu.pipeline_mode<synchronous>, transform_indices = @transform_3, window_bounds = array<i64: 1, 128>}, {transform_indices = @transform_4, window_bounds = array<i64: 8, 128>}]} {
    %c0 = arith.constant 0 : index
    %c0_0 = arith.constant 0 : index
    %0 = vector.load %arg2[%c0, %c0_0] : memref<8x32xf32, #tpu.memory_space<vmem>>, vector<8x32xf32>
    %c0_1 = arith.constant 0 : index
    %c0_2 = arith.constant 0 : index
    %1 = vector.load %arg3[%c0_1, %c0_2] : memref<32x128xf32, #tpu.memory_space<vmem>>, vector<32x128xf32>
    %cst = arith.constant dense<0.000000e+00> : vector<8x128xf32>
    %2 = tpu.matmul %0, %1, %cst {dimension_numbers = #tpu.dot_dimension_numbers<[1], [0], [0], [1], [0, 0, 1, 1], [], []>} : vector<8x32xf32>, vector<32x128xf32>, vector<8x128xf32> -> vector<8x128xf32>
    %c0_3 = arith.constant 0 : index
    %c0_4 = arith.constant 0 : index
    %3 = vector.load %arg4[%c0_3, %c0_4] : memref<1x128xf32, #tpu.memory_space<vmem>>, vector<1x128xf32>
    %4 = vector.broadcast %3 : vector<1x128xf32> to vector<8x128xf32>
    %5 = arith.addf %2, %4 : vector<8x128xf32>
    %6 = vector.extract_strided_slice %5 {offsets = [0, 16], sizes = [8, 1], strides = [1, 1]} : vector<8x128xf32> to vector<8x1xf32>
    %c0_5 = arith.constant 0 : index
    %c0_6 = arith.constant 0 : index
    %7 = memref.load %arg1[%c0_5, %c0_6] : memref<1x1xf32, #tpu.memory_space<smem>>
    %8 = vector.broadcast %7 : f32 to vector<8x1xf32>
    %9 = arith.subf %6, %8 : vector<8x1xf32>
    %10 = vector.broadcast %9 : vector<8x1xf32> to vector<8x128xf32>
    %11 = arith.addf %5, %10 : vector<8x128xf32>
    %c0_7 = arith.constant 0 : index
    %c0_8 = arith.constant 0 : index
    %12 = vector.load %arg5[%c0_7, %c0_8] : memref<8x128xf32, #tpu.memory_space<vmem>>, vector<8x128xf32>
    tpu.vector_store %arg5[%c0_7, %c0_8], %11 {strides = array<i32>} : memref<8x128xf32, #tpu.memory_space<vmem>>, vector<8x128xf32>,
    return
  }
  func.func @transform_0(%arg0: i32) -> (i32, i32) {
    %c0_i32 = arith.constant 0 : i32
    %c0_i32_0 = arith.constant 0 : i32
    %c0_i32_1 = arith.constant 0 : i32
    return %c0_i32, %c0_i32_0 : i32, i32
  }
  func.func @transform_1(%arg0: i32) -> (i32, i32) {
    %c0_i32 = arith.constant 0 : i32
    %c0_i32_0 = arith.constant 0 : i32
    return %arg0, %c0_i32 : i32, i32
  }
  func.func @transform_2(%arg0: i32) -> (i32, i32) {
    %c0_i32 = arith.constant 0 : i32
    %c0_i32_0 = arith.constant 0 : i32
    %c0_i32_1 = arith.constant 0 : i32
    return %c0_i32, %c0_i32_0 : i32, i32
  }
  func.func @transform_3(%arg0: i32) -> (i32, i32) {
    %c0_i32 = arith.constant 0 : i32
    %c0_i32_0 = arith.constant 0 : i32
    %c0_i32_1 = arith.constant 0 : i32
    return %c0_i32, %c0_i32_0 : i32, i32
  }
  func.func @transform_4(%arg0: i32) -> (i32, i32) {
    %c0_i32 = arith.constant 0 : i32
    %c0_i32_0 = arith.constant 0 : i32
    return %arg0, %c0_i32 : i32, i32
  }
}

</mosaic_0001>

<llo_original>
// kernel: tpu_custom_call.1
$region0: #{tpu_custom_call.1}
  #allocation0 [shape = 'u32[]', space=smem, size = 0x4, offset = 0x4, fixed_abs, tag = 'smem constant byte address 0x4 - core index']
  #allocation1 [shape = 'u32[72,128]{1,0:T(1,128)}', space=vmem, size = 0x9000, scoped, tag = 'internal scratch']
  #allocation2 [shape = 'f32[1,1]{1,0:T(1,128)S(6)}', space=smem, size = 0x200, scoped, tag = 'scoped memory for tpu_custom_call.1']
  %s0 = inlined_call_operand.<no memory space> [shape: f32[1,1], index: 0, kind: input, shape index: {}]
  %s1 = inlined_call_operand.hbm [shape: f32[16,32], index: 1, kind: input, shape index: {}]
  %s2 = inlined_call_operand.hbm [shape: f32[32,128], index: 2, kind: input, shape index: {}]
  %s3 = inlined_call_operand.vmem [shape: f32[1,128], index: 3, kind: input, shape index: {}]
  %s4 = inlined_call_operand.hbm [shape: f32[16,128], index: 4, kind: output, shape index: {}]
  %s5 = sld [smem:[#allocation0]]
  $region57: #{tpu_custom_call.1} parent=0
    _
  %s7 = ssub.s32 1, %s5
  %s8 = scalar_select 0, %s7, %s5
  %9 = sst [smem:[#allocation2]] %s0
  $region1: #{tpu_custom_call.1} parent=0
    #allocation3 [shape = 'u8[8192]{0}', space=vmem, size = 0x2000, scoped, tag = 'input window, operand 1']
    #allocation4 [shape = 's32[2]{0}', space=sflag, size = 0x8, scoped, tag = 'scoped memory for tpu_custom_call.1']
    #allocation5 [shape = 's32[2]{0}', space=sflag, size = 0x8, scoped, tag = 'scoped memory for tpu_custom_call.1']
    #allocation6 [shape = 'u8[16384]{0}', space=vmem, size = 0x4000, scoped, tag = 'input window, operand 2, single buffered']
    #allocation7 [shape = 's32[1]{0}', space=sflag, size = 0x4, scoped, tag = 'scoped memory for tpu_custom_call.1']
    #allocation8 [shape = 'u8[8192]{0}', space=vmem, size = 0x2000, scoped, tag = 'output window, operand 0']
    %10 = vsyncpa [#allocation4], 0
    %s11 = scalar_lea.sflag [#allocation4], 1
    %12 = vsyncpa %s11, 0
    %13 = vsyncpa [#allocation7], 0
    %14 = vsyncpa [#allocation5], 0
    %s15 = scalar_lea.sflag [#allocation5], 1
    %16 = vsyncpa %s15, 0
    loop: start=0, step=1, limit=4
    $region2: #{tpu_custom_call.1} parent=1 // loop_pre_header
      _
    $region3: #{tpu_custom_call.1} parent=1 // loop_header
      %s18 = sphi 0, %s22
      %p19 = scmp.ge.s32.totalorder %s18, 4
      %s26 = sphi 0, %s26
      %s28 = sphi 0, %s26
      %s29 = sphi 0, %s28
      %s43 = sphi 0, %s29
      %s49 = sphi 0, %s51
      %s52 = sphi 0, %s49
      %s53 = sphi 0, %s52
      %s69 = sphi 0, %s53
      %s73 = sphi 0, %s73
      %s75 = sphi 0, %s73
      %s76 = sphi 0, %s75
      %s90 = sphi 0, %s76
      %s94 = sphi 0, %s94
      %s96 = sphi 0, %s94
      %s97 = sphi 0, %s96
      %s111 = sphi 0, %s97
      %s117 = sphi 0, %s119
      %s120 = sphi 0, %s117
      %s121 = sphi 0, %s120
      %s137 = sphi 0, %s121
    $region4: #{tpu_custom_call.1} parent=1 // loop_header_branch
      %21 = sbr.rel (%p19) target = $region8
    $region5: #{tpu_custom_call.1} parent=1 // loop_body
      %s23 = ssub.s32 %s18, 1
      %s24 = ssub.s32 %s18, 2
      %s25 = sadd.s32 %s18, 1
      %s27 = sadd.s32 %s26, 1
      %p30 = scmp.eq.s32.totalorder %s18, 1
      %p31 = scmp.ne.s32.totalorder %s26, %s28
      %p32 = scmp.eq.s32.totalorder %s18, 0
      %p33 = por %p31, %p32
      %p34 = scmp.ne.s32.totalorder %s26, %s28
      %p35 = scmp.eq.s32.totalorder %s23, 1
      %p36 = por %p34, %p35
      %p37 = scmp.ne.s32.totalorder %s28, %s29
      %p38 = scmp.eq.s32.totalorder %s23, 0
      %p39 = por %p37, %p38
      %p40 = scmp.ne.s32.totalorder %s28, %s29
      %p41 = scmp.eq.s32.totalorder %s24, 1
      %p42 = por %p40, %p41
      %p44 = scmp.ne.s32.totalorder %s29, %s43
      %p45 = scmp.eq.s32.totalorder %s24, 0
      %p46 = por %p44, %p45
      %s47 = ssub.s32 %s18, %s25
      %p48 = scmp.eq.s32.totalorder %s47, 0
      %s50 = sadd.s32 %s49, 1
      %s51 = scalar_select %p48, %s49, %s50
      %p54 = pneg %p48
      %p55 = scmp.eq.s32.totalorder %s18, 1
      %p56 = por %p54, %p55
      %p57 = scmp.ne.s32.totalorder %s49, %s52
      %p58 = scmp.eq.s32.totalorder %s18, 0
      %p59 = por %p57, %p58
      %p60 = scmp.ne.s32.totalorder %s49, %s52
      %p61 = scmp.eq.s32.totalorder %s23, 1
      %p62 = por %p60, %p61
      %p63 = scmp.ne.s32.totalorder %s52, %s53
      %p64 = scmp.eq.s32.totalorder %s23, 0
      %p65 = por %p63, %p64
      %p66 = scmp.ne.s32.totalorder %s52, %s53
      %p67 = scmp.eq.s32.totalorder %s24, 1
      %p68 = por %p66, %p67
      %p70 = scmp.ne.s32.totalorder %s53, %s69
      %p71 = scmp.eq.s32.totalorder %s24, 0
      %p72 = por %p70, %p71
      %s74 = sadd.s32 %s73, 1
      %p77 = scmp.eq.s32.totalorder %s18, 1
      %p78 = scmp.ne.s32.totalorder %s73, %s75
      %p79 = scmp.eq.s32.totalorder %s18, 0
      %p80 = por %p78, %p79
      %p81 = scmp.ne.s32.totalorder %s73, %s75
      %p82 = scmp.eq.s32.totalorder %s23, 1
      %p83 = por %p81, %p82
      %p84 = scmp.ne.s32.totalorder %s75, %s76
      %p85 = scmp.eq.s32.totalorder %s23, 0
      %p86 = por %p84, %p85
      %p87 = scmp.ne.s32.totalorder %s75, %s76
      %p88 = scmp.eq.s32.totalorder %s24, 1
      %p89 = por %p87, %p88
      %p91 = scmp.ne.s32.totalorder %s76, %s90
      %p92 = scmp.eq.s32.totalorder %s24, 0
      %p93 = por %p91, %p92
      %s95 = sadd.s32 %s94, 1
      %p98 = scmp.eq.s32.totalorder %s18, 1
      %p99 = scmp.ne.s32.totalorder %s94, %s96
      %p100 = scmp.eq.s32.totalorder %s18, 0
      %p101 = por %p99, %p100
      %p102 = scmp.ne.s32.totalorder %s94, %s96
      %p103 = scmp.eq.s32.totalorder %s23, 1
      %p104 = por %p102, %p103
      %p105 = scmp.ne.s32.totalorder %s96, %s97
      %p106 = scmp.eq.s32.totalorder %s23, 0
      %p107 = por %p105, %p106
      %p108 = scmp.ne.s32.totalorder %s96, %s97
      %p109 = scmp.eq.s32.totalorder %s24, 1
      %p110 = por %p108, %p109
      %p112 = scmp.ne.s32.totalorder %s97, %s111
      %p113 = scmp.eq.s32.totalorder %s24, 0
      %p114 = por %p112, %p113
      %s115 = ssub.s32 %s18, %s25
      %p116 = scmp.eq.s32.totalorder %s115, 0
      %s118 = sadd.s32 %s117, 1
      %s119 = scalar_select %p116, %s117, %s118
      %p122 = pneg %p116
      %p123 = scmp.eq.s32.totalorder %s18, 1
      %p124 = por %p122, %p123
      %p125 = scmp.ne.s32.totalorder %s117, %s120
      %p126 = scmp.eq.s32.totalorder %s18, 0
      %p127 = por %p125, %p126
      %p128 = scmp.ne.s32.totalorder %s117, %s120
      %p129 = scmp.eq.s32.totalorder %s23, 1
      %p130 = por %p128, %p129
      %p131 = scmp.ne.s32.totalorder %s120, %s121
      %p132 = scmp.eq.s32.totalorder %s23, 0
      %p133 = por %p131, %p132
      %p134 = scmp.ne.s32.totalorder %s120, %s121
      %p135 = scmp.eq.s32.totalorder %s24, 1
      %p136 = por %p134, %p135
      %p138 = scmp.ne.s32.totalorder %s121, %s137
      %p139 = scmp.eq.s32.totalorder %s24, 0
      %p140 = por %p138, %p139
      %p141 = scmp.le.s32.totalorder 1, %s18
      %p142 = scmp.lt.s32.totalorder %s18, 3
      %p143 = pnand %p141, %p142
      %p144 = pneg %p143
      // Predicated region
      $region9: #{tpu_custom_call.1} parent=5 // pred_check
        _
      $region10: #{tpu_custom_call.1} parent=5 // pred_check_branch
        %146 = sbr.rel (%p143) target = $region12
      $region11: #{tpu_custom_call.1} parent=5 // pred_region
        %s147 = ssub.s32 %s18, 1
        // Predicated region
        $region13: #{tpu_custom_call.1} parent=11 // pred_check
          %p148 = pneg %p39
        $region14: #{tpu_custom_call.1} parent=11 // pred_check_branch
          %150 = sbr.rel (%p148) target = $region16
        $region15: #{tpu_custom_call.1} parent=11 // pred_region
          _
        $region16: #{tpu_custom_call.1} parent=11 // pred_fallthru
          _
        // Predicated region
        $region17: #{tpu_custom_call.1} parent=11 // pred_check
          %p151 = pneg %p86
        $region18: #{tpu_custom_call.1} parent=11 // pred_check_branch
          %153 = sbr.rel (%p151) target = $region20
        $region19: #{tpu_custom_call.1} parent=11 // pred_region
          %155 = vsyncadd [#allocation7], 0
          %s156 = sshll.u32 %s2, 4
          %s157 = int_to_ptr.hbm [resolvable:$true] %s156
          %s158 = sshll.u32 [#allocation6], 4
          %s159 = int_to_ptr.vmem [resolvable:$true] %s158
          %164 = dma.hbm_to_vmem [thread:$0]  %s157, 512, %s159, [#allocation7], 128, 128, 8
        $region20: #{tpu_custom_call.1} parent=11 // pred_fallthru
          _
        // Predicated region
        $region21: #{tpu_custom_call.1} parent=11 // pred_check
          %p165 = pneg %p107
        $region22: #{tpu_custom_call.1} parent=11 // pred_check_branch
          %167 = sbr.rel (%p165) target = $region24
        $region23: #{tpu_custom_call.1} parent=11 // pred_region
          _
        $region24: #{tpu_custom_call.1} parent=11 // pred_fallthru
          _
      $region12: #{tpu_custom_call.1} parent=5 // pred_fallthru
        _
      %p168 = scmp.lt.s32.totalorder %s18, 2
      // Predicated region
      $region25: #{tpu_custom_call.1} parent=5 // pred_check
        %p169 = pneg %p168
      $region26: #{tpu_custom_call.1} parent=5 // pred_check_branch
        %171 = sbr.rel (%p169) target = $region28
      $region27: #{tpu_custom_call.1} parent=5 // pred_region
        // Predicated region
        $region29: #{tpu_custom_call.1} parent=27 // pred_check
          %p172 = pneg %p59
        $region30: #{tpu_custom_call.1} parent=27 // pred_check_branch
          %174 = sbr.rel (%p172) target = $region32
        $region31: #{tpu_custom_call.1} parent=27 // pred_region
          %s175 = sand.u32 %s49, 1
          %s176 = scalar_lea.sflag [#allocation4], %s175
          %s177 = sand.u32 %s49, 1
          %s178 = smul.addr %s177, 8
          %s179 = scalar_lea.vmem [#allocation3], %s178
          %181 = vsyncadd %s176, 0
          %s182 = smul.addr %s18, 8
          %s183 = scalar_lea.hbm %s1, %s182
          %s185 = sshll.u32 %s183, 4
          %s186 = int_to_ptr.hbm [resolvable:$true] %s185
          %s187 = sshll.u32 %s179, 4
          %s188 = int_to_ptr.vmem [resolvable:$true] %s187
          %190 = dma.hbm_to_vmem [thread:$0]  %s186, 128, %s188, %s176
        $region32: #{tpu_custom_call.1} parent=27 // pred_fallthru
          _
      $region28: #{tpu_custom_call.1} parent=5 // pred_fallthru
        _
      %p191 = scmp.le.s32.totalorder 1, %s18
      %p192 = scmp.lt.s32.totalorder %s18, 3
      %p193 = pnand %p191, %p192
      %p194 = pneg %p193
      // Predicated region
      $region33: #{tpu_custom_call.1} parent=5 // pred_check
        _
      $region34: #{tpu_custom_call.1} parent=5 // pred_check_branch
        %196 = sbr.rel (%p193) target = $region36
      $region35: #{tpu_custom_call.1} parent=5 // pred_region
        %s197 = ssub.s32 %s18, 1
        %s198 = sand.u32 %s52, 1
        %s199 = scalar_lea.sflag [#allocation4], %s198
        %s200 = sand.u32 %s52, 1
        %s201 = smul.addr %s200, 8
        %s202 = scalar_lea.vmem [#allocation3], %s201
        // Predicated region
        $region37: #{tpu_custom_call.1} parent=35 // pred_check
          %p203 = pneg %p65
        $region38: #{tpu_custom_call.1} parent=35 // pred_check_branch
          %205 = sbr.rel (%p203) target = $region40
        $region39: #{tpu_custom_call.1} parent=35 // pred_region
          %207 = dma.done %s199, 128
        $region40: #{tpu_custom_call.1} parent=35 // pred_fallthru
          _
        // Predicated region
        $region41: #{tpu_custom_call.1} parent=35 // pred_check
          %p208 = pneg %p86
        $region42: #{tpu_custom_call.1} parent=35 // pred_check_branch
          %210 = sbr.rel (%p208) target = $region44
        $region43: #{tpu_custom_call.1} parent=35 // pred_region
          %212 = dma.done [#allocation7], 512
        $region44: #{tpu_custom_call.1} parent=35 // pred_fallthru
          _
        %p213 = pneg %p39
        %p214 = pneg %p36
        %s215 = sand.u32 %s52, 1
        %s216 = scalar_lea.sflag [#allocation4], %s215
        %s217 = sand.u32 %s52, 1
        %s218 = smul.addr %s217, 8
        %s219 = scalar_lea.vmem [#allocation3], %s218
        %p220 = pneg %p65
        %p221 = pneg %p62
        %p222 = pneg %p86
        %p223 = pneg %p83
        %p224 = pneg %p107
        %p225 = pneg %p104
        %p226 = pneg %p133
        %p227 = pneg %p130
        %s228 = sand.u32 %s120, 1
        %s229 = scalar_lea.sflag [#allocation5], %s228
        %s230 = sand.u32 %s120, 1
        %s231 = smul.addr %s230, 8
        %s232 = scalar_lea.vmem [#allocation8], %s231
        %v233 = vld [vmem:[%s202] sm:$0xff]
        %v234 = vld [vmem:[#allocation6] sm:$0xff]
        %v235 = vld [vmem:[#allocation6 + $0x8] sm:$0xff]
        %v236 = vld [vmem:[#allocation6 + $0x10] sm:$0xff]
        %v237 = vld [vmem:[#allocation6 + $0x18] sm:$0xff]
        %v238 = vld [vmem:[%s3] sm:$0x1]
        %v240 = vperm.slane %v238, 0
        %vm242 = vcmask 261120
        %v244 = vsel %vm242, %v233, 0
        %246 = vmatpush.msra.mxu0 0.0
        %247 = vmatpush.msra.mxu0 0.0
        %248 = vmatpush.msra.mxu0 0.0
        %249 = vmatpush.msra.mxu0 0.0
        %250 = vmatpush.msra.mxu0 0.0
        %251 = vmatpush.msra.mxu0 0.0
        %252 = vmatpush.msra.mxu0 0.0
        %253 = vmatpush.msra.mxu0 0.0
        %254 = vmatpush.msra.mxu0 0.0
        %255 = vmatpush.msra.mxu0 0.0
        %256 = vmatpush.msra.mxu0 0.0
        %257 = vmatpush.msra.mxu0 0.0
        %258 = vmatpush.msra.mxu0 %v237
        %259 = vmatpush.msra.mxu0 %v236
        %260 = vmatpush.msra.mxu0 %v235
        %261 = vmatpush.msra.mxu0 %v234
        %262 = vmatmul.f32.gmra.mxu0 %v244
        %v263 = vpop.f32.mrf.mxu0
        %v264 = vadd.f32 %v240, %v263
        %265 = vdwg.mxu0
        %s266 = sld [smem:[#allocation2]]
        %v267 = vstv %s266
        %v268 = vsub.f32 %v264, %v267
        %270 = vset.pattern.permute.xlu0 16
        %271 = vperm.xlu0 %270, %v268
        %v272 = vpop.permute.xlu0 %271
        %v274 = vadd.f32 %v264, %v272
        %275 = vst [vmem:[%s232] sm:$0xff] %v274
        %s276 = sand.u32 %s120, 1
        %s277 = scalar_lea.sflag [#allocation5], %s276
        %s278 = sand.u32 %s120, 1
        %s279 = smul.addr %s278, 8
        %s280 = scalar_lea.vmem [#allocation8], %s279
        // Predicated region
        $region45: #{tpu_custom_call.1} parent=35 // pred_check
          %p281 = pneg %p130
        $region46: #{tpu_custom_call.1} parent=35 // pred_check_branch
          %283 = sbr.rel (%p281) target = $region48
        $region47: #{tpu_custom_call.1} parent=35 // pred_region
          %285 = vsyncadd %s277, 0
          %s286 = smul.addr %s23, 8
          %s287 = scalar_lea.hbm %s4, %s286
          %s289 = sshll.u32 %s280, 4
          %s290 = int_to_ptr.vmem [resolvable:$true] %s289
          %s291 = sshll.u32 %s287, 4
          %s292 = int_to_ptr.hbm [resolvable:$true] %s291
          %294 = dma.vmem_to_hbm [thread:$0]  %s290, 128, %s292, %s277
        $region48: #{tpu_custom_call.1} parent=35 // pred_fallthru
          _
      $region36: #{tpu_custom_call.1} parent=5 // pred_fallthru
        _
      %p295 = scmp.le.s32.totalorder 2, %s18
      // Predicated region
      $region49: #{tpu_custom_call.1} parent=5 // pred_check
        %p296 = pneg %p295
      $region50: #{tpu_custom_call.1} parent=5 // pred_check_branch
        %298 = sbr.rel (%p296) target = $region52
      $region51: #{tpu_custom_call.1} parent=5 // pred_region
        %s299 = ssub.s32 %s18, 2
        // Predicated region
        $region53: #{tpu_custom_call.1} parent=51 // pred_check
          %p300 = pneg %p136
        $region54: #{tpu_custom_call.1} parent=51 // pred_check_branch
          %302 = sbr.rel (%p300) target = $region56
        $region55: #{tpu_custom_call.1} parent=51 // pred_region
          %s303 = sand.u32 %s121, 1
          %s304 = scalar_lea.sflag [#allocation5], %s303
          %s305 = sand.u32 %s121, 1
          %s306 = smul.addr %s305, 8
          %s307 = scalar_lea.vmem [#allocation8], %s306
          %309 = dma.done %s304, 128
        $region56: #{tpu_custom_call.1} parent=51 // pred_fallthru
          _
      $region52: #{tpu_custom_call.1} parent=5 // pred_fallthru
        _
    $region6: #{tpu_custom_call.1} parent=1 // loop_footer
      %s22 = sadd.s32 1, %s18
    $region7: #{tpu_custom_call.1} parent=1 // loop_footer_branch
      %17 = sbr.rel target = $region3
    $region8: #{tpu_custom_call.1} parent=1 // loop_exit
      _
    %310 = vsyncpa [#allocation4], 1
    %s311 = scalar_lea.sflag [#allocation4], 1
    %312 = vsyncpa %s311, 1
    %313 = vsyncpa [#allocation7], 1
    %314 = vsyncpa [#allocation5], 1
    %s315 = scalar_lea.sflag [#allocation5], 1
    %316 = vsyncpa %s315, 1

</llo_original>
